<compile_context>
chip_gen: v6e
topology: v6e:2x2x1
jax: 0.10.0
libtpu: 0.0.40
codegen_flags: <defaults>
</compile_context>

<pallas_src>
import functools

import jax
import jax.numpy as jnp
from jax.experimental import pallas as pl
from jax.experimental.pallas import tpu as pltpu


def _sdpa_kernel(q_ref, k_ref, v_ref, out_ref, attn_ref, *, inv_scale):
    # q_ref: (TQ, D), k_ref: (Lk, D), v_ref: (Lk, Dv) -- batch dim squeezed.
    # Keep operands in their native dtype; accumulate in f32 on the MXU.
    q = q_ref[...] * jnp.asarray(inv_scale, q_ref.dtype)
    k = k_ref[...]
    v = v_ref[...]

    # scores: (TQ, Lk) = (q / scale) @ k^T, expressed as a direct contraction of
    # the last dims (no explicit transpose of k).
    scores = jax.lax.dot_general(
        q, k,
        dimension_numbers=(((1,), (1,)), ((), ())),
        preferred_element_type=jnp.float32,
    )

    # Numerically-stable softmax over the last axis.
    m = jnp.max(scores, axis=-1, keepdims=True)
    e = jnp.exp(scores - m)
    denom = jnp.sum(e, axis=-1, keepdims=True)
    # EUP approximate reciprocal + one Newton-Raphson step (~f32 accuracy).
    r = pl.reciprocal(denom, approx=True)
    r = r * (2.0 - denom * r)
    attn = e * r

    attn_ref[...] = attn.astype(attn_ref.dtype)
    # output: (TQ, Dv) = attn @ v, with attn cast to v's dtype for the MXU.
    out_ref[...] = jnp.dot(
        attn.astype(v.dtype), v, preferred_element_type=jnp.float32
    ).astype(out_ref.dtype)


def _pick_q_tile(lq):
    """Largest convenient Lq tile that evenly divides Lq (full Lq if small)."""
    for t in (512, 256, 128):
        if lq % t == 0:
            return t
    return lq


def scaled_dot_product_attention(query, key, value, scaling_factor):
    """Pallas implementation of the ScaledDotProductAttention forward pass.

    Args:
      query: (B, Lq, D)
      key:   (B, Lk, D)
      value: (B, Lk, Dv)
      scaling_factor: python float; the query is divided by it before QK^T.

    Returns:
      (output, attention): ((B, Lq, Dv), (B, Lq, Lk))
    """
    B, Lq, D = query.shape
    Bk, Lk, Dk = key.shape
    Bv, Lv, Dv = value.shape
    assert B == Bk == Bv and D == Dk and Lk == Lv

    tq = _pick_q_tile(Lq)
    num_q_blocks = Lq // tq

    kernel = functools.partial(
        _sdpa_kernel, inv_scale=1.0 / float(scaling_factor)
    )

    out_shapes = (
        jax.ShapeDtypeStruct((B, Lq, Dv), query.dtype),
        jax.ShapeDtypeStruct((B, Lq, Lk), query.dtype),
    )

    grid_spec = pltpu.PrefetchScalarGridSpec(
        num_scalar_prefetch=0,
        grid=(B, num_q_blocks),
        in_specs=[
            # Q is tiled along Lq; K/V blocks are reused across the q-tile axis.
            pl.BlockSpec((None, tq, D), lambda b, q: (b, q, 0)),
            pl.BlockSpec((None, Lk, D), lambda b, q: (b, 0, 0)),
            pl.BlockSpec((None, Lk, Dv), lambda b, q: (b, 0, 0)),
        ],
        out_specs=[
            pl.BlockSpec((None, tq, Dv), lambda b, q: (b, q, 0)),
            pl.BlockSpec((None, tq, Lk), lambda b, q: (b, q, 0)),
        ],
    )

    # Advisory cost estimate: two matmuls + softmax elementwise work.
    matmul_flops = 2 * B * Lq * Lk * (D + Dv)
    softmax_flops = 5 * B * Lq * Lk
    itemsize = jnp.dtype(query.dtype).itemsize
    bytes_accessed = itemsize * (
        B * Lq * D + B * Lk * D + B * Lk * Dv + B * Lq * Dv + B * Lq * Lk
    )
    cost = pl.CostEstimate(
        flops=matmul_flops + softmax_flops,
        transcendentals=B * Lq * Lk,
        bytes_accessed=bytes_accessed,
    )

    # Explicit scoped-VMEM budget: double-buffered blocks + f32 scores scratch,
    # clamped to stay comfortably inside every generation's physical VMEM.
    block_bytes = 2 * itemsize * (
        tq * D + Lk * D + Lk * Dv + tq * Dv + tq * Lk
    )
    f32_work_bytes = 4 * (tq * Lk + tq * Dv)
    vmem_limit = int(
        min(48 * 1024 * 1024,
            max(32 * 1024 * 1024, 4 * (block_bytes + f32_work_bytes)))
    )

    return pl.pallas_call(
        kernel,
        out_shape=out_shapes,
        grid_spec=grid_spec,
        compiler_params=pltpu.CompilerParams(
            dimension_semantics=("parallel", "parallel"),
            vmem_limit_bytes=vmem_limit,
        ),
        cost_estimate=cost,
    )(query, key, value)


def _reference(query, key, value, scaling_factor):
    scores = jnp.einsum("bqd,bkd->bqk", query / scaling_factor, key)
    attn = jax.nn.softmax(scores, axis=-1)
    out = jnp.einsum("bqk,bkd->bqd", attn, value)
    return out, attn


if __name__ == "__main__":
    # Small shapes consistent with the module's forward semantics.
    B, Lq, Lk, D, Dv = 2, 8, 16, 32, 32
    scaling_factor = float(D) ** 0.5  # typical sqrt(d_k) scaling

    key0 = jax.random.PRNGKey(0)
    kq, kk, kv = jax.random.split(key0, 3)
    query = jax.random.normal(kq, (B, Lq, D), dtype=jnp.float32)
    key_t = jax.random.normal(kk, (B, Lk, D), dtype=jnp.float32)
    value = jax.random.normal(kv, (B, Lk, Dv), dtype=jnp.float32)

    out, attn = scaled_dot_product_attention(query, key_t, value, scaling_factor)
    jax.block_until_ready((out, attn))

    ref_out, ref_attn = _reference(query, key_t, value, scaling_factor)
    assert out.shape == (B, Lq, Dv)
    assert attn.shape == (B, Lq, Lk)
    assert jnp.allclose(out, ref_out, atol=1e-5, rtol=1e-5)
    assert jnp.allclose(attn, ref_attn, atol=1e-5, rtol=1e-5)

    print("KERNEL_OK")
</pallas_src>

<mosaic_0001>
module attributes {stable_mosaic.version = 11 : i64} {
  func.func @_sdpa_kernel(%arg0: i32, %arg1: i32, %arg2: memref<1x8x32xf32, #tpu.memory_space<vmem>>, %arg3: memref<1x16x32xf32, #tpu.memory_space<vmem>>, %arg4: memref<1x16x32xf32, #tpu.memory_space<vmem>>, %arg5: memref<1x8x32xf32, #tpu.memory_space<vmem>>, %arg6: memref<1x8x16xf32, #tpu.memory_space<vmem>>) attributes {dimension_semantics = [#tpu.dimension_semantics<parallel>, #tpu.dimension_semantics<parallel>], iteration_bounds = array<i64: 2, 1>, scalar_prefetch = 0 : i64, scratch_operands = 0 : i64, tpu.core_type = #tpu.core_type<tc>, window_params = [{transform_indices = @transform_0, window_bounds = array<i64: 1, 8, 32>}, {transform_indices = @transform_1, window_bounds = array<i64: 1, 16, 32>}, {transform_indices = @transform_2, window_bounds = array<i64: 1, 16, 32>}, {transform_indices = @transform_3, window_bounds = array<i64: 1, 8, 32>}, {transform_indices = @transform_4, window_bounds = array<i64: 1, 8, 16>}]} {
    %c0 = arith.constant 0 : index
    %c0_0 = arith.constant 0 : index
    %c0_1 = arith.constant 0 : index
    %0 = vector.load %arg2[%c0, %c0_0, %c0_1] : memref<1x8x32xf32, #tpu.memory_space<vmem>>, vector<1x8x32xf32>
    %1 = vector.shape_cast %0 : vector<1x8x32xf32> to vector<8x32xf32>
    %cst = arith.constant 0.176776692 : f32
    %2 = vector.broadcast %cst : f32 to vector<8x32xf32>
    %3 = arith.mulf %1, %2 : vector<8x32xf32>
    %c0_2 = arith.constant 0 : index
    %c0_3 = arith.constant 0 : index
    %c0_4 = arith.constant 0 : index
    %4 = vector.load %arg3[%c0_2, %c0_3, %c0_4] : memref<1x16x32xf32, #tpu.memory_space<vmem>>, vector<1x16x32xf32>
    %5 = vector.shape_cast %4 : vector<1x16x32xf32> to vector<16x32xf32>
    %c0_5 = arith.constant 0 : index
    %c0_6 = arith.constant 0 : index
    %c0_7 = arith.constant 0 : index
    %6 = vector.load %arg4[%c0_5, %c0_6, %c0_7] : memref<1x16x32xf32, #tpu.memory_space<vmem>>, vector<1x16x32xf32>
    %7 = vector.shape_cast %6 : vector<1x16x32xf32> to vector<16x32xf32>
    %cst_8 = arith.constant dense<0.000000e+00> : vector<8x16xf32>
    %8 = tpu.matmul %3, %5, %cst_8 {dimension_numbers = #tpu.dot_dimension_numbers<[1], [1], [0], [0], [0, 0, 1, 0], [], []>} : vector<8x32xf32>, vector<16x32xf32>, vector<8x16xf32> -> vector<8x16xf32>
    %cst_9 = arith.constant dense<0xFF800000> : vector<8xf32>
    %9 = vector.multi_reduction <maximumf>, %8, %cst_9 [1] : vector<8x16xf32> to vector<8xf32>
    %10 = vector.shape_cast %9 : vector<8xf32> to vector<8x1xf32>
    %11 = vector.broadcast %10 : vector<8x1xf32> to vector<8x16xf32>
    %12 = arith.subf %8, %11 : vector<8x16xf32>
    %13 = math.exp %12 : vector<8x16xf32>
    %cst_10 = arith.constant dense<0.000000e+00> : vector<8xf32>
    %14 = vector.multi_reduction <add>, %13, %cst_10 [1] : vector<8x16xf32> to vector<8xf32>
    %15 = vector.shape_cast %14 : vector<8xf32> to vector<8x1xf32>
    %16 = tpu.reciprocal %15 {approx = true} : vector<8x1xf32> -> vector<8x1xf32>
    %17 = arith.mulf %15, %16 : vector<8x1xf32>
    %cst_11 = arith.constant 2.000000e+00 : f32
    %18 = vector.broadcast %cst_11 : f32 to vector<8x1xf32>
    %19 = arith.subf %18, %17 : vector<8x1xf32>
    %20 = arith.mulf %16, %19 : vector<8x1xf32>
    %21 = vector.broadcast %20 : vector<8x1xf32> to vector<8x16xf32>
    %22 = arith.mulf %13, %21 : vector<8x16xf32>
    %c0_12 = arith.constant 0 : index
    %c0_13 = arith.constant 0 : index
    %c0_14 = arith.constant 0 : index
    %23 = vector.load %arg6[%c0_12, %c0_13, %c0_14] : memref<1x8x16xf32, #tpu.memory_space<vmem>>, vector<1x8x16xf32>
    %24 = vector.shape_cast %23 : vector<1x8x16xf32> to vector<8x16xf32>
    %25 = vector.shape_cast %22 : vector<8x16xf32> to vector<1x8x16xf32>
    tpu.vector_store %arg6[%c0_12, %c0_13, %c0_14], %25 {strides = array<i32>} : memref<1x8x16xf32, #tpu.memory_space<vmem>>, vector<1x8x16xf32>,
    %cst_15 = arith.constant dense<0.000000e+00> : vector<8x32xf32>
    %26 = tpu.matmul %22, %7, %cst_15 {dimension_numbers = #tpu.dot_dimension_numbers<[1], [0], [0], [1], [0, 0, 1, 1], [], []>} : vector<8x16xf32>, vector<16x32xf32>, vector<8x32xf32> -> vector<8x32xf32>
    %c0_16 = arith.constant 0 : index
    %c0_17 = arith.constant 0 : index
    %c0_18 = arith.constant 0 : index
    %27 = vector.load %arg5[%c0_16, %c0_17, %c0_18] : memref<1x8x32xf32, #tpu.memory_space<vmem>>, vector<1x8x32xf32>
    %28 = vector.shape_cast %27 : vector<1x8x32xf32> to vector<8x32xf32>
    %29 = vector.shape_cast %26 : vector<8x32xf32> to vector<1x8x32xf32>
    tpu.vector_store %arg5[%c0_16, %c0_17, %c0_18], %29 {strides = array<i32>} : memref<1x8x32xf32, #tpu.memory_space<vmem>>, vector<1x8x32xf32>,
    return
  }
  func.func @transform_0(%arg0: i32, %arg1: i32) -> (i32, i32, i32) {
    %c0_i32 = arith.constant 0 : i32
    %c0_i32_0 = arith.constant 0 : i32
    return %arg0, %arg1, %c0_i32 : i32, i32, i32
  }
  func.func @transform_1(%arg0: i32, %arg1: i32) -> (i32, i32, i32) {
    %c0_i32 = arith.constant 0 : i32
    %c0_i32_0 = arith.constant 0 : i32
    %c0_i32_1 = arith.constant 0 : i32
    return %arg0, %c0_i32, %c0_i32_0 : i32, i32, i32
  }
  func.func @transform_2(%arg0: i32, %arg1: i32) -> (i32, i32, i32) {
    %c0_i32 = arith.constant 0 : i32
    %c0_i32_0 = arith.constant 0 : i32
    %c0_i32_1 = arith.constant 0 : i32
    return %arg0, %c0_i32, %c0_i32_0 : i32, i32, i32
  }
  func.func @transform_3(%arg0: i32, %arg1: i32) -> (i32, i32, i32) {
    %c0_i32 = arith.constant 0 : i32
    %c0_i32_0 = arith.constant 0 : i32
    return %arg0, %arg1, %c0_i32 : i32, i32, i32
  }
  func.func @transform_4(%arg0: i32, %arg1: i32) -> (i32, i32, i32) {
    %c0_i32 = arith.constant 0 : i32
    %c0_i32_0 = arith.constant 0 : i32
    return %arg0, %arg1, %c0_i32 : i32, i32, i32
  }
}

</mosaic_0001>

<llo_original>
// kernel: tpu_custom_call.1
$region0: #{tpu_custom_call.1}
  #allocation0 [shape = 'u32[]', space=smem, size = 0x4, offset = 0x4, fixed_abs, tag = 'smem constant byte address 0x4 - core index']
  #allocation1 [shape = 'u32[144,128]{1,0:T(1,128)}', space=vmem, size = 0x12000, scoped, tag = 'internal scratch']
  %s0 = inlined_call_operand.hbm [shape: f32[2,8,32], index: 0, kind: input, shape index: {}]
  %s1 = inlined_call_operand.hbm [shape: f32[2,16,32], index: 1, kind: input, shape index: {}]
  %s2 = inlined_call_operand.hbm [shape: f32[2,16,32], index: 2, kind: input, shape index: {}]
  %s3 = inlined_call_operand.hbm [shape: f32[2,8,32], index: 3, kind: output, shape index: {0}]
  %s4 = inlined_call_operand.hbm [shape: f32[2,8,16], index: 4, kind: output, shape index: {1}]
  %5 = xla_tuple %s3, %s4
  %s6 = sld [smem:[#allocation0]]
  $region65: #{tpu_custom_call.1} parent=0
    _
  %s8 = ssub.s32 1, %s6
  %s9 = scalar_select 0, %s8, %s6
  $region1: #{tpu_custom_call.1} parent=0
    #allocation2 [shape = 'u8[8192]{0}', space=vmem, size = 0x2000, scoped, tag = 'input window, operand 0']
    #allocation3 [shape = 's32[2]{0}', space=sflag, size = 0x8, scoped, tag = 'scoped memory for tpu_custom_call.1']
    #allocation4 [shape = 's32[2]{0}', space=sflag, size = 0x8, scoped, tag = 'scoped memory for tpu_custom_call.1']
    #allocation5 [shape = 'u8[16384]{0}', space=vmem, size = 0x4000, scoped, tag = 'input window, operand 1']
    #allocation6 [shape = 's32[2]{0}', space=sflag, size = 0x8, scoped, tag = 'scoped memory for tpu_custom_call.1']
    #allocation7 [shape = 'u8[16384]{0}', space=vmem, size = 0x4000, scoped, tag = 'input window, operand 2']
    #allocation8 [shape = 'u8[8192]{0}', space=vmem, size = 0x2000, scoped, tag = 'output window, operand 0']
    #allocation9 [shape = 'u8[8192]{0}', space=vmem, size = 0x2000, scoped, tag = 'output window, operand 1']
    #allocation10 [shape = 's32[2]{0}', space=sflag, size = 0x8, scoped, tag = 'scoped memory for tpu_custom_call.1']
    %10 = vsyncpa [#allocation3], 0
    %s11 = scalar_lea.sflag [#allocation3], 1
    %12 = vsyncpa %s11, 0
    %13 = vsyncpa [#allocation6], 0
    %s14 = scalar_lea.sflag [#allocation6], 1
    %15 = vsyncpa %s14, 0
    %16 = vsyncpa [#allocation4], 0
    %s17 = scalar_lea.sflag [#allocation4], 1
    %18 = vsyncpa %s17, 0
    %19 = vsyncpa [#allocation10], 0
    %s20 = scalar_lea.sflag [#allocation10], 1
    %21 = vsyncpa %s20, 0
    loop: start=0, step=1, limit=4
    $region2: #{tpu_custom_call.1} parent=1 // loop_pre_header
      _
    $region3: #{tpu_custom_call.1} parent=1 // loop_header
      %s23 = sphi 0, %s27
      %p24 = scmp.ge.s32.totalorder %s23, 4
      %s30 = sphi 0, %s42
      %s31 = sphi 0, %s38
      %s32 = sphi 0, %s30
      %s33 = sphi 0, %s31
      %s34 = sphi 0, %s32
      %s35 = sphi 0, %s33
      %s47 = sphi 0, %s49
      %s50 = sphi 0, %s47
      %s51 = sphi 0, %s50
      %s67 = sphi 0, %s51
      %s73 = sphi 0, %s75
      %s76 = sphi 0, %s73
      %s77 = sphi 0, %s76
      %s93 = sphi 0, %s77
      %s99 = sphi 0, %s101
      %s102 = sphi 0, %s99
      %s103 = sphi 0, %s102
      %s119 = sphi 0, %s103
      %s127 = sphi 0, %s129
      %s130 = sphi 0, %s127
      %s131 = sphi 0, %s130
      %s147 = sphi 0, %s131
      %s155 = sphi 0, %s157
      %s158 = sphi 0, %s155
      %s159 = sphi 0, %s158
      %s175 = sphi 0, %s159
    $region4: #{tpu_custom_call.1} parent=1 // loop_header_branch
      %26 = sbr.rel (%p24) target = $region8
    $region5: #{tpu_custom_call.1} parent=1 // loop_body
      %s28 = ssub.s32 %s23, 1
      %s29 = ssub.s32 %s23, 2
      %s36 = sadd.s32 1, %s31
      %p37 = scmp.ge.s32.totalorder %s36, 1
      %s38 = scalar_select %p37, 0, %s36
      %s39 = sadd.s32 1, %s30
      %s40 = scalar_select %p37, %s39, %s30
      %p41 = scmp.ge.s32.totalorder %s40, 2
      %s42 = scalar_select %p41, 0, %s40
      %s43 = ssub.s32 %s30, %s42
      %s44 = ssub.s32 %s31, %s38
      %s45 = sor.u32 %s43, %s44
      %p46 = scmp.eq.s32.totalorder %s45, 0
      %s48 = sadd.s32 %s47, 1
      %s49 = scalar_select %p46, %s47, %s48
      %p52 = pneg %p46
      %p53 = scmp.eq.s32.totalorder %s23, 1
      %p54 = por %p52, %p53
      %p55 = scmp.ne.s32.totalorder %s47, %s50
      %p56 = scmp.eq.s32.totalorder %s23, 0
      %p57 = por %p55, %p56
      %p58 = scmp.ne.s32.totalorder %s47, %s50
      %p59 = scmp.eq.s32.totalorder %s28, 1
      %p60 = por %p58, %p59
      %p61 = scmp.ne.s32.totalorder %s50, %s51
      %p62 = scmp.eq.s32.totalorder %s28, 0
      %p63 = por %p61, %p62
      %p64 = scmp.ne.s32.totalorder %s50, %s51
      %p65 = scmp.eq.s32.totalorder %s29, 1
      %p66 = por %p64, %p65
      %p68 = scmp.ne.s32.totalorder %s51, %s67
      %p69 = scmp.eq.s32.totalorder %s29, 0
      %p70 = por %p68, %p69
      %s71 = ssub.s32 %s30, %s42
      %p72 = scmp.eq.s32.totalorder %s71, 0
      %s74 = sadd.s32 %s73, 1
      %s75 = scalar_select %p72, %s73, %s74
      %p78 = pneg %p72
      %p79 = scmp.eq.s32.totalorder %s23, 1
      %p80 = por %p78, %p79
      %p81 = scmp.ne.s32.totalorder %s73, %s76
      %p82 = scmp.eq.s32.totalorder %s23, 0
      %p83 = por %p81, %p82
      %p84 = scmp.ne.s32.totalorder %s73, %s76
      %p85 = scmp.eq.s32.totalorder %s28, 1
      %p86 = por %p84, %p85
      %p87 = scmp.ne.s32.totalorder %s76, %s77
      %p88 = scmp.eq.s32.totalorder %s28, 0
      %p89 = por %p87, %p88
      %p90 = scmp.ne.s32.totalorder %s76, %s77
      %p91 = scmp.eq.s32.totalorder %s29, 1
      %p92 = por %p90, %p91
      %p94 = scmp.ne.s32.totalorder %s77, %s93
      %p95 = scmp.eq.s32.totalorder %s29, 0
      %p96 = por %p94, %p95
      %s97 = ssub.s32 %s30, %s42
      %p98 = scmp.eq.s32.totalorder %s97, 0
      %s100 = sadd.s32 %s99, 1
      %s101 = scalar_select %p98, %s99, %s100
      %p104 = pneg %p98
      %p105 = scmp.eq.s32.totalorder %s23, 1
      %p106 = por %p104, %p105
      %p107 = scmp.ne.s32.totalorder %s99, %s102
      %p108 = scmp.eq.s32.totalorder %s23, 0
      %p109 = por %p107, %p108
      %p110 = scmp.ne.s32.totalorder %s99, %s102
      %p111 = scmp.eq.s32.totalorder %s28, 1
      %p112 = por %p110, %p111
      %p113 = scmp.ne.s32.totalorder %s102, %s103
      %p114 = scmp.eq.s32.totalorder %s28, 0
      %p115 = por %p113, %p114
      %p116 = scmp.ne.s32.totalorder %s102, %s103
      %p117 = scmp.eq.s32.totalorder %s29, 1
      %p118 = por %p116, %p117
      %p120 = scmp.ne.s32.totalorder %s103, %s119
      %p121 = scmp.eq.s32.totalorder %s29, 0
      %p122 = por %p120, %p121
      %s123 = ssub.s32 %s30, %s42
      %s124 = ssub.s32 %s31, %s38
      %s125 = sor.u32 %s123, %s124
      %p126 = scmp.eq.s32.totalorder %s125, 0
      %s128 = sadd.s32 %s127, 1
      %s129 = scalar_select %p126, %s127, %s128
      %p132 = pneg %p126
      %p133 = scmp.eq.s32.totalorder %s23, 1
      %p134 = por %p132, %p133
      %p135 = scmp.ne.s32.totalorder %s127, %s130
      %p136 = scmp.eq.s32.totalorder %s23, 0
      %p137 = por %p135, %p136
      %p138 = scmp.ne.s32.totalorder %s127, %s130
      %p139 = scmp.eq.s32.totalorder %s28, 1
      %p140 = por %p138, %p139
      %p141 = scmp.ne.s32.totalorder %s130, %s131
      %p142 = scmp.eq.s32.totalorder %s28, 0
      %p143 = por %p141, %p142
      %p144 = scmp.ne.s32.totalorder %s130, %s131
      %p145 = scmp.eq.s32.totalorder %s29, 1
      %p146 = por %p144, %p145
      %p148 = scmp.ne.s32.totalorder %s131, %s147
      %p149 = scmp.eq.s32.totalorder %s29, 0
      %p150 = por %p148, %p149
      %s151 = ssub.s32 %s30, %s42
      %s152 = ssub.s32 %s31, %s38
      %s153 = sor.u32 %s151, %s152
      %p154 = scmp.eq.s32.totalorder %s153, 0
      %s156 = sadd.s32 %s155, 1
      %s157 = scalar_select %p154, %s155, %s156
      %p160 = pneg %p154
      %p161 = scmp.eq.s32.totalorder %s23, 1
      %p162 = por %p160, %p161
      %p163 = scmp.ne.s32.totalorder %s155, %s158
      %p164 = scmp.eq.s32.totalorder %s23, 0
      %p165 = por %p163, %p164
      %p166 = scmp.ne.s32.totalorder %s155, %s158
      %p167 = scmp.eq.s32.totalorder %s28, 1
      %p168 = por %p166, %p167
      %p169 = scmp.ne.s32.totalorder %s158, %s159
      %p170 = scmp.eq.s32.totalorder %s28, 0
      %p171 = por %p169, %p170
      %p172 = scmp.ne.s32.totalorder %s158, %s159
      %p173 = scmp.eq.s32.totalorder %s29, 1
      %p174 = por %p172, %p173
      %p176 = scmp.ne.s32.totalorder %s159, %s175
      %p177 = scmp.eq.s32.totalorder %s29, 0
      %p178 = por %p176, %p177
      %p179 = scmp.le.s32.totalorder 1, %s23
      %p180 = scmp.lt.s32.totalorder %s23, 3
      %p181 = pnand %p179, %p180
      %p182 = pneg %p181
      // Predicated region
      $region9: #{tpu_custom_call.1} parent=5 // pred_check
        _
      $region10: #{tpu_custom_call.1} parent=5 // pred_check_branch
        %184 = sbr.rel (%p181) target = $region12
      $region11: #{tpu_custom_call.1} parent=5 // pred_region
        %s185 = ssub.s32 %s23, 1
      $region12: #{tpu_custom_call.1} parent=5 // pred_fallthru
        _
      %p186 = scmp.lt.s32.totalorder %s23, 2
      // Predicated region
      $region13: #{tpu_custom_call.1} parent=5 // pred_check
        %p187 = pneg %p186
      $region14: #{tpu_custom_call.1} parent=5 // pred_check_branch
        %189 = sbr.rel (%p187) target = $region16
      $region15: #{tpu_custom_call.1} parent=5 // pred_region
        // Predicated region
        $region17: #{tpu_custom_call.1} parent=15 // pred_check
          %p190 = pneg %p57
        $region18: #{tpu_custom_call.1} parent=15 // pred_check_branch
          %192 = sbr.rel (%p190) target = $region20
        $region19: #{tpu_custom_call.1} parent=15 // pred_region
          %s193 = sand.u32 %s47, 1
          %s194 = scalar_lea.sflag [#allocation3], %s193
          %s195 = sand.u32 %s47, 1
          %s196 = smul.addr %s195, 8
          %s197 = scalar_lea.vmem [#allocation2], %s196
          %s199 = ssub.s32 128, 128
          %200 = vsyncadd %s194, %s199
          %s201 = sadd.s32 %s31, %s30
          %s202 = smul.addr %s201, 128
          %s203 = scalar_lea.hbm %s0, %s202
          %s205 = sshll.u32 %s197, 4
          %s206 = int_to_ptr.vmem [resolvable:$true] %s205
          %208 = dma.hbm_to_vmem [thread:$0]  %s203, 128, %s206, %s194
        $region20: #{tpu_custom_call.1} parent=15 // pred_fallthru
          _
        // Predicated region
        $region21: #{tpu_custom_call.1} parent=15 // pred_check
          %p209 = pneg %p83
        $region22: #{tpu_custom_call.1} parent=15 // pred_check_branch
          %211 = sbr.rel (%p209) target = $region24
        $region23: #{tpu_custom_call.1} parent=15 // pred_region
          %s212 = sand.u32 %s23, 1
          %s213 = scalar_lea.sflag [#allocation6], %s212
          %s214 = sand.u32 %s73, 1
          %s215 = smul.addr %s214, 16
          %s216 = scalar_lea.vmem [#allocation5], %s215
          %s218 = ssub.s32 256, 256
          %219 = vsyncadd %s213, %s218
          %s220 = smul.addr %s30, 2
          %s221 = smul.addr %s220, 128
          %s222 = scalar_lea.hbm %s1, %s221
          %s223 = sshll.u32 %s216, 4
          %s224 = int_to_ptr.vmem [resolvable:$true] %s223
          %229 = dma.hbm_to_vmem [thread:$0]  %s222, 256, %s224, %s213, 128, 128, 8
        $region24: #{tpu_custom_call.1} parent=15 // pred_fallthru
          _
        // Predicated region
        $region25: #{tpu_custom_call.1} parent=15 // pred_check
          %p230 = pneg %p109
        $region26: #{tpu_custom_call.1} parent=15 // pred_check_branch
          %232 = sbr.rel (%p230) target = $region28
        $region27: #{tpu_custom_call.1} parent=15 // pred_region
          %s233 = sand.u32 %s23, 1
          %s234 = scalar_lea.sflag [#allocation6], %s233
          %s235 = sand.u32 %s99, 1
          %s236 = smul.addr %s235, 16
          %s237 = scalar_lea.vmem [#allocation7], %s236
          %s239 = ssub.s32 256, 256
          %240 = vsyncadd %s234, %s239
          %s241 = smul.addr %s30, 2
          %s242 = smul.addr %s241, 128
          %s243 = scalar_lea.hbm %s2, %s242
          %s244 = sshll.u32 %s237, 4
          %s245 = int_to_ptr.vmem [resolvable:$true] %s244
          %250 = dma.hbm_to_vmem [thread:$0]  %s243, 256, %s245, %s234, 128, 128, 8
        $region28: #{tpu_custom_call.1} parent=15 // pred_fallthru
          _
      $region16: #{tpu_custom_call.1} parent=5 // pred_fallthru
        _
      %p251 = scmp.le.s32.totalorder 1, %s23
      %p252 = scmp.lt.s32.totalorder %s23, 3
      %p253 = pnand %p251, %p252
      %p254 = pneg %p253
      // Predicated region
      $region29: #{tpu_custom_call.1} parent=5 // pred_check
        _
      $region30: #{tpu_custom_call.1} parent=5 // pred_check_branch
        %256 = sbr.rel (%p253) target = $region32
      $region31: #{tpu_custom_call.1} parent=5 // pred_region
        %s257 = ssub.s32 %s23, 1
        %s258 = sand.u32 %s50, 1
        %s259 = scalar_lea.sflag [#allocation3], %s258
        %s260 = sand.u32 %s50, 1
        %s261 = smul.addr %s260, 8
        %s262 = scalar_lea.vmem [#allocation2], %s261
        // Predicated region
        $region33: #{tpu_custom_call.1} parent=31 // pred_check
          %p263 = pneg %p63
        $region34: #{tpu_custom_call.1} parent=31 // pred_check_branch
          %265 = sbr.rel (%p263) target = $region36
        $region35: #{tpu_custom_call.1} parent=31 // pred_region
          %266 = dma.done %s259, 128
        $region36: #{tpu_custom_call.1} parent=31 // pred_fallthru
          _
        %s267 = sand.u32 %s28, 1
        %s268 = scalar_lea.sflag [#allocation6], %s267
        %s269 = sand.u32 %s76, 1
        %s270 = smul.addr %s269, 16
        %s271 = scalar_lea.vmem [#allocation5], %s270
        // Predicated region
        $region37: #{tpu_custom_call.1} parent=31 // pred_check
          %p272 = pneg %p89
        $region38: #{tpu_custom_call.1} parent=31 // pred_check_branch
          %274 = sbr.rel (%p272) target = $region40
        $region39: #{tpu_custom_call.1} parent=31 // pred_region
          %275 = dma.done %s268, 256
        $region40: #{tpu_custom_call.1} parent=31 // pred_fallthru
          _
        %s276 = sand.u32 %s28, 1
        %s277 = scalar_lea.sflag [#allocation6], %s276
        %s278 = sand.u32 %s102, 1
        %s279 = smul.addr %s278, 16
        %s280 = scalar_lea.vmem [#allocation7], %s279
        // Predicated region
        $region41: #{tpu_custom_call.1} parent=31 // pred_check
          %p281 = pneg %p115
        $region42: #{tpu_custom_call.1} parent=31 // pred_check_branch
          %283 = sbr.rel (%p281) target = $region44
        $region43: #{tpu_custom_call.1} parent=31 // pred_region
          %284 = dma.done %s277, 256
        $region44: #{tpu_custom_call.1} parent=31 // pred_fallthru
          _
        %s285 = sand.u32 %s50, 1
        %s286 = scalar_lea.sflag [#allocation3], %s285
        %s287 = sand.u32 %s50, 1
        %s288 = smul.addr %s287, 8
        %s289 = scalar_lea.vmem [#allocation2], %s288
        %p290 = pneg %p63
        %p291 = pneg %p60
        %s292 = sand.u32 %s28, 1
        %s293 = scalar_lea.sflag [#allocation6], %s292
        %s294 = sand.u32 %s76, 1
        %s295 = smul.addr %s294, 16
        %s296 = scalar_lea.vmem [#allocation5], %s295
        %p297 = pneg %p89
        %p298 = pneg %p86
        %s299 = sand.u32 %s28, 1
        %s300 = scalar_lea.sflag [#allocation6], %s299
        %s301 = sand.u32 %s102, 1
        %s302 = smul.addr %s301, 16
        %s303 = scalar_lea.vmem [#allocation7], %s302
        %p304 = pneg %p115
        %p305 = pneg %p112
        %p306 = pneg %p143
        %p307 = pneg %p140
        %s308 = sand.u32 %s130, 1
        %s309 = scalar_lea.sflag [#allocation4], %s308
        %s310 = sand.u32 %s130, 1
        %s311 = smul.addr %s310, 8
        %s312 = scalar_lea.vmem [#allocation8], %s311
        %p313 = pneg %p171
        %p314 = pneg %p168
        %s315 = sand.u32 %s158, 1
        %s316 = scalar_lea.sflag [#allocation10], %s315
        %s317 = sand.u32 %s158, 1
        %s318 = smul.addr %s317, 8
        %s319 = scalar_lea.vmem [#allocation9], %s318
        %v320 = vld [vmem:[%s262] sm:$0xff]
        %v321 = vmul.f32 %v320, 0.17677669
        %v322 = vld [vmem:[%s271] sm:$0xff]
        %v323 = vld [vmem:[%s271 + $0x8] sm:$0xff]
        %v324 = vld [vmem:[%s280] sm:$0xff]
        %v325 = vld [vmem:[%s280 + $0x8] sm:$0xff]
        %vm326 = vcmask 261120
        %v328 = vsel %vm326, %v321, 0
        %v331 = vsel %vm326, %v322, 0
        %v334 = vsel %vm326, %v323, 0
        %336 = vmatprep.subr.mxu0 0.0
        %337 = vmatpush1.xpose.msra.mxu0 0.0
        %338 = vmatprep.subr.mxu0 0.0
        %339 = vmatpush1.xpose.msra.mxu0 0.0
        %340 = vmatprep.subr.mxu0 0.0
        %341 = vmatpush1.xpose.msra.mxu0 0.0
        %342 = vmatprep.subr.mxu0 0.0
        %343 = vmatpush1.xpose.msra.mxu0 0.0
        %344 = vmatprep.subr.mxu0 0.0
        %345 = vmatpush1.xpose.msra.mxu0 0.0
        %346 = vmatprep.subr.mxu0 0.0
        %347 = vmatpush1.xpose.msra.mxu0 0.0
        %348 = vmatprep.subr.mxu0 0.0
        %349 = vmatpush1.xpose.msra.mxu0 0.0
        %350 = vmatprep.subr.mxu0 0.0
        %351 = vmatpush1.xpose.msra.mxu0 0.0
        %352 = vmatprep.subr.mxu0 0.0
        %353 = vmatpush1.xpose.msra.mxu0 0.0
        %354 = vmatprep.subr.mxu0 0.0
        %355 = vmatpush1.xpose.msra.mxu0 0.0
        %356 = vmatprep.subr.mxu0 0.0
        %357 = vmatpush1.xpose.msra.mxu0 0.0
        %358 = vmatprep.subr.mxu0 0.0
        %359 = vmatpush1.xpose.msra.mxu0 0.0
        %360 = vmatprep.subr.mxu0 0.0
        %361 = vmatpush1.xpose.msra.mxu0 0.0
        %362 = vmatprep.subr.mxu0 0.0
        %363 = vmatpush1.xpose.msra.mxu0 0.0
        %364 = vmatprep.subr.mxu0 0.0
        %365 = vmatpush1.xpose.msra.mxu0 %v334
        %366 = vmatprep.subr.mxu0 0.0
        %367 = vmatpush1.xpose.msra.mxu0 %v331
        %368 = vmatprep.subr.mxu0 0.0
        %369 = vmatpush2.xpose.msra.mxu0 0.0
        %370 = vmatprep.subr.mxu0 0.0
        %371 = vmatpush2.xpose.msra.mxu0 0.0
        %372 = vmatprep.subr.mxu0 0.0
        %373 = vmatpush2.xpose.msra.mxu0 0.0
        %374 = vmatprep.subr.mxu0 0.0
        %375 = vmatpush2.xpose.msra.mxu0 0.0
        %376 = vmatprep.subr.mxu0 0.0
        %377 = vmatpush2.xpose.msra.mxu0 0.0
        %378 = vmatprep.subr.mxu0 0.0
        %379 = vmatpush2.xpose.msra.mxu0 0.0
        %380 = vmatprep.subr.mxu0 0.0
        %381 = vmatpush2.xpose.msra.mxu0 0.0
        %382 = vmatprep.subr.mxu0 0.0
        %383 = vmatpush2.xpose.msra.mxu0 0.0
        %384 = vmatprep.subr.mxu0 0.0
        %385 = vmatpush2.xpose.msra.mxu0 0.0
        %386 = vmatprep.subr.mxu0 0.0
        %387 = vmatpush2.xpose.msra.mxu0 0.0
        %388 = vmatprep.subr.mxu0 0.0
        %389 = vmatpush2.xpose.msra.mxu0 0.0
        %390 = vmatprep.subr.mxu0 0.0
        %391 = vmatpush2.xpose.msra.mxu0 0.0
        %392 = vmatprep.subr.mxu0 0.0
        %393 = vmatpush2.xpose.msra.mxu0 0.0
        %394 = vmatprep.subr.mxu0 0.0
        %395 = vmatpush2.xpose.msra.mxu0 0.0
        %396 = vmatprep.subr.mxu0 0.0
        %397 = vmatpush2.xpose.msra.mxu0 0.0
        %398 = vmatprep.subr.mxu0 0.0
        %399 = vmatpush2.xpose.msra.mxu0 0.0
        %400 = vmatprep.mubr.f32.mxu0 0.0
        %401 = vmatmul.mubr.f32.gmra.mxu0 %v328
        %v402 = vpop.f32.mrf.mxu0
        %v403 = vadd.f32 0.0, %v402
        %v404 = vpop.f32.mrf.mxu0
        %405 = vdwg.mxu0
        %vm406 = vcmask 130048
        %v407 = vsel %vm406, %v403, -inf
        %408 = vmax.xlane.f32.xlu0 %v407
        %v409 = vpop.xlane.xlu0 %408
        %v410 = vsub.f32 %v403, %v409
        %v411 = vmul.f32 %v410, 1.442695
        %v412 = vpow.pop %v411
        %v413 = vsel %vm406, %v412, 0.0
        %414 = vadd.xlane.f32.xlu0 %v413
        %v415 = vpop.xlane.xlu0 %414
        %v416 = vrcp.pop %v415
        %v417 = vmul.f32 %v415, %v416
        %v418 = vsub.f32 2.0, %v417
        %v419 = vmul.f32 %v416, %v418
        %v420 = vmul.f32 %v412, %v419
        %421 = vst.msk [vmem:[%s319] sm:$0xff] %vm406, %v420
        %v423 = vsel %vm406, %v420, 0
        %425 = vmatprep.subr.mxu0 0.0
        %426 = vmatpush1.msra.mxu0 0.0
        %427 = vmatprep.subr.mxu0 0.0
        %428 = vmatpush1.msra.mxu0 0.0
        %429 = vmatprep.subr.mxu0 0.0
        %430 = vmatpush1.msra.mxu0 0.0
        %431 = vmatprep.subr.mxu0 0.0
        %432 = vmatpush1.msra.mxu0 0.0
        %433 = vmatprep.subr.mxu0 0.0
        %434 = vmatpush1.msra.mxu0 0.0
        %435 = vmatprep.subr.mxu0 0.0
        %436 = vmatpush1.msra.mxu0 0.0
        %437 = vmatprep.subr.mxu0 0.0
        %438 = vmatpush1.msra.mxu0 0.0
        %439 = vmatprep.subr.mxu0 0.0
        %440 = vmatpush1.msra.mxu0 0.0
        %441 = vmatprep.subr.mxu0 0.0
        %442 = vmatpush1.msra.mxu0 0.0
        %443 = vmatprep.subr.mxu0 0.0
        %444 = vmatpush1.msra.mxu0 0.0
        %445 = vmatprep.subr.mxu0 0.0
        %446 = vmatpush1.msra.mxu0 0.0
        %447 = vmatprep.subr.mxu0 0.0
        %448 = vmatpush1.msra.mxu0 0.0
        %449 = vmatprep.subr.mxu0 0.0
        %450 = vmatpush1.msra.mxu0 0.0
        %451 = vmatprep.subr.mxu0 0.0
        %452 = vmatpush1.msra.mxu0 0.0
        %453 = vmatprep.subr.mxu0 0.0
        %454 = vmatpush1.msra.mxu0 %v325
        %455 = vmatprep.subr.mxu0 0.0
        %456 = vmatpush1.msra.mxu0 %v324
        %457 = vmatprep.subr.mxu0 0.0
        %458 = vmatpush2.msra.mxu0 0.0
        %459 = vmatprep.subr.mxu0 0.0
        %460 = vmatpush2.msra.mxu0 0.0
        %461 = vmatprep.subr.mxu0 0.0
        %462 = vmatpush2.msra.mxu0 0.0
        %463 = vmatprep.subr.mxu0 0.0
        %464 = vmatpush2.msra.mxu0 0.0
        %465 = vmatprep.subr.mxu0 0.0
        %466 = vmatpush2.msra.mxu0 0.0
        %467 = vmatprep.subr.mxu0 0.0
        %468 = vmatpush2.msra.mxu0 0.0
        %469 = vmatprep.subr.mxu0 0.0
        %470 = vmatpush2.msra.mxu0 0.0
        %471 = vmatprep.subr.mxu0 0.0
        %472 = vmatpush2.msra.mxu0 0.0
        %473 = vmatprep.subr.mxu0 0.0
        %474 = vmatpush2.msra.mxu0 0.0
        %475 = vmatprep.subr.mxu0 0.0
        %476 = vmatpush2.msra.mxu0 0.0
        %477 = vmatprep.subr.mxu0 0.0
        %478 = vmatpush2.msra.mxu0 0.0
        %479 = vmatprep.subr.mxu0 0.0
        %480 = vmatpush2.msra.mxu0 0.0
        %481 = vmatprep.subr.mxu0 0.0
        %482 = vmatpush2.msra.mxu0 0.0
        %483 = vmatprep.subr.mxu0 0.0
        %484 = vmatpush2.msra.mxu0 0.0
        %485 = vmatprep.subr.mxu0 0.0
        %486 = vmatpush2.msra.mxu0 0.0
        %487 = vmatprep.subr.mxu0 0.0
        %488 = vmatpush2.msra.mxu0 0.0
        %489 = vmatprep.mubr.f32.mxu0 0.0
        %490 = vmatmul.mubr.f32.gmra.mxu0 %v423
        %v491 = vpop.f32.mrf.mxu0
        %v492 = vadd.f32 0.0, %v491
        %v493 = vpop.f32.mrf.mxu0
        %494 = vdwg.mxu0
        %495 = vst.msk [vmem:[%s312] sm:$0xff] %vm326, %v492
        %s496 = sand.u32 %s130, 1
        %s497 = scalar_lea.sflag [#allocation4], %s496
        %s498 = sand.u32 %s130, 1
        %s499 = smul.addr %s498, 8
        %s500 = scalar_lea.vmem [#allocation8], %s499
        %s501 = sand.u32 %s158, 1
        %s502 = scalar_lea.sflag [#allocation10], %s501
        %s503 = sand.u32 %s158, 1
        %s504 = smul.addr %s503, 8
        %s505 = scalar_lea.vmem [#allocation9], %s504
        // Predicated region
        $region45: #{tpu_custom_call.1} parent=31 // pred_check
          %p506 = pneg %p140
        $region46: #{tpu_custom_call.1} parent=31 // pred_check_branch
          %508 = sbr.rel (%p506) target = $region48
        $region47: #{tpu_custom_call.1} parent=31 // pred_region
          %s510 = ssub.s32 128, 128
          %511 = vsyncadd %s497, %s510
          %s512 = sadd.s32 %s33, %s32
          %s513 = smul.addr %s512, 128
          %s514 = scalar_lea.hbm %s3, %s513
          %s516 = sshll.u32 %s500, 4
          %s517 = int_to_ptr.vmem [resolvable:$true] %s516
          %519 = dma.vmem_to_hbm [thread:$0]  %s517, 128, %s514, %s497
        $region48: #{tpu_custom_call.1} parent=31 // pred_fallthru
          _
        // Predicated region
        $region49: #{tpu_custom_call.1} parent=31 // pred_check
          %p520 = pneg %p168
        $region50: #{tpu_custom_call.1} parent=31 // pred_check_branch
          %522 = sbr.rel (%p520) target = $region52
        $region51: #{tpu_custom_call.1} parent=31 // pred_region
          %s524 = ssub.s32 128, 128
          %525 = vsyncadd %s502, %s524
          %s526 = sadd.s32 %s33, %s32
          %s527 = smul.addr %s526, 128
          %s528 = scalar_lea.hbm %s4, %s527
          %s530 = sshll.u32 %s505, 4
          %s531 = int_to_ptr.vmem [resolvable:$true] %s530
          %533 = dma.vmem_to_hbm [thread:$0]  %s531, 128, %s528, %s502
        $region52: #{tpu_custom_call.1} parent=31 // pred_fallthru
          _
      $region32: #{tpu_custom_call.1} parent=5 // pred_fallthru
        _
      %p534 = scmp.le.s32.totalorder 2, %s23
      // Predicated region
      $region53: #{tpu_custom_call.1} parent=5 // pred_check
        %p535 = pneg %p534
      $region54: #{tpu_custom_call.1} parent=5 // pred_check_branch
        %537 = sbr.rel (%p535) target = $region56
      $region55: #{tpu_custom_call.1} parent=5 // pred_region
        %s538 = ssub.s32 %s23, 2
        // Predicated region
        $region57: #{tpu_custom_call.1} parent=55 // pred_check
          %p539 = pneg %p146
        $region58: #{tpu_custom_call.1} parent=55 // pred_check_branch
          %541 = sbr.rel (%p539) target = $region60
        $region59: #{tpu_custom_call.1} parent=55 // pred_region
          %s542 = sand.u32 %s131, 1
          %s543 = scalar_lea.sflag [#allocation4], %s542
          %s544 = sand.u32 %s131, 1
          %s545 = smul.addr %s544, 8
          %s546 = scalar_lea.vmem [#allocation8], %s545
          %547 = dma.done %s543, 128
        $region60: #{tpu_custom_call.1} parent=55 // pred_fallthru
          _
        // Predicated region
        $region61: #{tpu_custom_call.1} parent=55 // pred_check
          %p548 = pneg %p174
        $region62: #{tpu_custom_call.1} parent=55 // pred_check_branch
          %550 = sbr.rel (%p548) target = $region64
        $region63: #{tpu_custom_call.1} parent=55 // pred_region
          %s551 = sand.u32 %s159, 1
          %s552 = scalar_lea.sflag [#allocation10], %s551
          %s553 = sand.u32 %s159, 1
          %s554 = smul.addr %s553, 8
          %s555 = scalar_lea.vmem [#allocation9], %s554
          %556 = dma.done %s552, 128
        $region64: #{tpu_custom_call.1} parent=55 // pred_fallthru
          _
      $region56: #{tpu_custom_call.1} parent=5 // pred_fallthru
        _
    $region6: #{tpu_custom_call.1} parent=1 // loop_footer
      %s27 = sadd.s32 1, %s23
    $region7: #{tpu_custom_call.1} parent=1 // loop_footer_branch
      %22 = sbr.rel target = $region3
    $region8: #{tpu_custom_call.1} parent=1 // loop_exit
      _
    %557 = vsyncpa [#allocation3], 1
    %s558 = scalar_lea.sflag [#allocation3], 1
    %559 = vsyncpa %s558, 1
    %560 = vsyncpa [#allocation6], 1
    %s561 = scalar_lea.sflag [#allocation6], 1
    %562 = vsyncpa %s561, 1
    %563 = vsyncpa [#allocation4], 1
    %s564 = scalar_lea.sflag [#allocation4], 1
    %565 = vsyncpa %s564, 1
    %566 = vsyncpa [#allocation10], 1
    %s567 = scalar_lea.sflag [#allocation10], 1
    %568 = vsyncpa %s567, 1

</llo_original>
